<compile_context>
chip_gen: v6e
topology: v6e:2x2x1
jax: 0.10.0
libtpu: 0.0.40
codegen_flags: <defaults>
</compile_context>

<pallas_src>
import jax
import jax.numpy as jnp
from jax.experimental import pallas as pl
from jax.experimental.pallas import tpu as pltpu

HIDDEN = 128
LEAKY_SLOPE = 0.01        # torch.nn.LeakyReLU default negative_slope
MAX_TM = 2048             # batch-tile ceiling (mem-bound roofline ~flat past 1024)
TILE_ALIGN = 16           # bf16 sublane pair
PALLAS_MIN_BATCH = 32     # below this, the fused XLA path beats pallas fixed cost


def _round_up(x, m):
    return ((x + m - 1) // m) * m


# ----------------------------------------------------------------------------
# Kernel
# ----------------------------------------------------------------------------
def actor_mlp_kernel(x_ref, w1_ref, b1_ref, w2_ref, b2_ref, out_ref):
    # Linear 1: cast the f32 x tile to bf16 in-register; f32 MXU accumulation.
    h = jnp.dot(x_ref[...].astype(jnp.bfloat16), w1_ref[...],
                preferred_element_type=jnp.float32)
    h = h + b1_ref[...]                       # bias-add in f32
    h = jnp.maximum(h, LEAKY_SLOPE * h)       # LeakyReLU (mul + max on the VPU)
    # Linear 2
    o = jnp.dot(h.astype(jnp.bfloat16), w2_ref[...],
                preferred_element_type=jnp.float32)
    out_ref[...] = (o + b2_ref[...]).astype(out_ref.dtype)


# ----------------------------------------------------------------------------
# Params
# ----------------------------------------------------------------------------
def init_actor_params(key, input_size, output_size, dtype=jnp.float32):
    """Deterministic synthetic init (torch-Linear-style uniform bounds)."""
    k1, k2, k3, k4 = jax.random.split(key, 4)
    bound1 = 1.0 / jnp.sqrt(jnp.asarray(input_size, dtype))
    bound2 = 1.0 / jnp.sqrt(jnp.asarray(HIDDEN, dtype))
    w1 = jax.random.uniform(k1, (input_size, HIDDEN), dtype, -bound1, bound1)
    b1 = jax.random.uniform(k2, (1, HIDDEN), dtype, -bound1, bound1)
    w2 = jax.random.uniform(k3, (HIDDEN, output_size), dtype, -bound2, bound2)
    b2 = jax.random.uniform(k4, (1, output_size), dtype, -bound2, bound2)
    return w1, b1, w2, b2


def prepare_actor_params(w1, b1, w2, b2):
    """One-time packing: bf16 matmul operands, f32 (1, N) biases.

    Done once at init so actor_forward issues no per-call pad/cast passes.
    """
    return (w1.astype(jnp.bfloat16),
            jnp.asarray(b1, jnp.float32).reshape(1, -1),
            w2.astype(jnp.bfloat16),
            jnp.asarray(b2, jnp.float32).reshape(1, -1))


# ----------------------------------------------------------------------------
# Forward
# ----------------------------------------------------------------------------
def _actor_forward_xla(x, w1_bf, b1, w2_bf, b2):
    """Fused plain-jnp path (same bf16-operand / f32-accumulate math).

    Used for tiny batches and as the correctness reference.
    """
    h = jnp.dot(x.astype(jnp.bfloat16), w1_bf,
                preferred_element_type=jnp.float32) + b1
    h = jnp.maximum(h, LEAKY_SLOPE * h)
    return jnp.dot(h.astype(jnp.bfloat16), w2_bf,
                   preferred_element_type=jnp.float32) + b2


def actor_forward(x, w1_bf, b1, w2_bf, b2):
    """Actor.forward: Linear(d_in,128) -> LeakyReLU -> Linear(128,d_out).

    x      : (B, d_in)  float32
    w1_bf  : (d_in, 128) bfloat16     b1: (1, 128)   float32
    w2_bf  : (128, d_out) bfloat16    b2: (1, d_out) float32
    Returns (B, d_out) float32 logits.
    """
    B, d_in = x.shape
    d_out = w2_bf.shape[1]

    # Tiny batches: pallas fixed cost (DMAs + per-step overhead) dominates.
    if B < PALLAS_MIN_BATCH:
        return _actor_forward_xla(x, w1_bf, b1, w2_bf, b2)

    # --- batch tile: 16-aligned, >=2 grid steps when possible (v7x dual-TC),
    #     capped both by MAX_TM and by a VMEM-derived row budget. ---
    b16 = _round_up(B, TILE_ALIGN)
    bytes_per_row = 2 * (d_in + d_out) * 4          # double-buffered x + out, f32
    tm_vmem_cap = max(TILE_ALIGN,
                      ((24 << 20) // max(bytes_per_row, 1)) // TILE_ALIGN * TILE_ALIGN)
    tm_split = max(TILE_ALIGN, _round_up(-(-b16 // 2), TILE_ALIGN))
    tm = min(MAX_TM, tm_vmem_cap, tm_split)
    grid_m = pl.cdiv(b16, tm)
    b_pad = grid_m * tm

    # Pad the batch only if it is not already a whole number of tiles.
    if b_pad != B:
        x_in = jnp.zeros((b_pad, d_in), x.dtype).at[:B, :].set(x)
    else:
        x_in = x

    # VMEM budget derived from the real footprint (v7x has 64 MiB physical).
    tile_bytes = (2 * tm * d_in * 4 + 2 * tm * d_out * 4            # x / out tiles
                  + 2 * (d_in * HIDDEN + HIDDEN * d_out) * 2        # bf16 weights
                  + 2 * (HIDDEN + d_out) * 4)                       # f32 biases
    vmem_limit = int(min(max(2 * tile_bytes + (4 << 20), 16 << 20), 48 << 20))

    cost = pl.CostEstimate(
        flops=2 * b_pad * (d_in * HIDDEN + HIDDEN * d_out),
        transcendentals=0,
        bytes_accessed=(b_pad * d_in * 4 + b_pad * d_out * 4
                        + (d_in * HIDDEN + HIDDEN * d_out) * 2
                        + (HIDDEN + d_out) * 4),
    )

    out_p = pl.pallas_call(
        actor_mlp_kernel,
        out_shape=jax.ShapeDtypeStruct((b_pad, d_out), jnp.float32),
        grid=(grid_m,),
        in_specs=[
            pl.BlockSpec((tm, d_in), lambda i: (i, 0)),       # x tile (full lane dim)
            pl.BlockSpec((d_in, HIDDEN), lambda i: (0, 0)),   # W1 resident
            pl.BlockSpec((1, HIDDEN), lambda i: (0, 0)),      # b1 resident
            pl.BlockSpec((HIDDEN, d_out), lambda i: (0, 0)),  # W2 resident
            pl.BlockSpec((1, d_out), lambda i: (0, 0)),       # b2 resident
        ],
        out_specs=pl.BlockSpec((tm, d_out), lambda i: (i, 0)),  # narrow, full-dim out
        compiler_params=pltpu.CompilerParams(
            dimension_semantics=("parallel",),
            vmem_limit_bytes=vmem_limit,
        ),
        cost_estimate=cost,
    )(x_in, w1_bf, b1, w2_bf, b2)

    return out_p if b_pad == B else out_p[:B]


# TODO(synk): choose_action's Categorical sampling / .numpy() host round-trip is
# not part of the forward pass and is left to plain JAX (jax.random.categorical).


if __name__ == "__main__":
    # Small shapes consistent with the module: an 8-feature state, 4 actions.
    # batch=64 exercises the Pallas path (2 grid steps of 32 rows each).
    batch, input_size, output_size = 64, 8, 4

    key = jax.random.PRNGKey(0)
    kx, kp = jax.random.split(key)
    x = jax.random.normal(kx, (batch, input_size), jnp.float32)
    w1, b1, w2, b2 = init_actor_params(kp, input_size, output_size)
    w1_bf, b1f, w2_bf, b2f = prepare_actor_params(w1, b1, w2, b2)

    logits = actor_forward(x, w1_bf, b1f, w2_bf, b2f)
    logits = jax.block_until_ready(logits)

    # Correctness check against the fused plain-jnp reference of the same math.
    ref = jax.block_until_ready(_actor_forward_xla(x, w1_bf, b1f, w2_bf, b2f))
    assert logits.shape == (batch, output_size)
    assert jnp.allclose(logits, ref, atol=2e-3, rtol=2e-3)

    print("KERNEL_OK")
</pallas_src>

<mosaic_0001>
module attributes {stable_mosaic.version = 11 : i64} {
  func.func @actor_mlp_kernel(%arg0: i32, %arg1: memref<32x8xf32, #tpu.memory_space<vmem>>, %arg2: memref<8x128xbf16, #tpu.memory_space<vmem>>, %arg3: memref<1x128xf32, #tpu.memory_space<vmem>>, %arg4: memref<128x4xbf16, #tpu.memory_space<vmem>>, %arg5: memref<1x4xf32, #tpu.memory_space<vmem>>, %arg6: memref<32x4xf32, #tpu.memory_space<vmem>>) attributes {dimension_semantics = [#tpu.dimension_semantics<parallel>], iteration_bounds = array<i64: 2>, scalar_prefetch = 0 : i64, scratch_operands = 0 : i64, tpu.core_type = #tpu.core_type<tc>, window_params = [{transform_indices = @transform_0, window_bounds = array<i64: 32, 8>}, {pipeline_mode = #tpu.pipeline_mode<synchronous>, transform_indices = @transform_1, window_bounds = array<i64: 8, 128>}, {pipeline_mode = #tpu.pipeline_mode<synchronous>, transform_indices = @transform_2, window_bounds = array<i64: 1, 128>}, {pipeline_mode = #tpu.pipeline_mode<synchronous>, transform_indices = @transform_3, window_bounds = array<i64: 128, 4>}, {pipeline_mode = #tpu.pipeline_mode<synchronous>, transform_indices = @transform_4, window_bounds = array<i64: 1, 4>}, {transform_indices = @transform_5, window_bounds = array<i64: 32, 4>}]} {
    %c0 = arith.constant 0 : index
    %c0_0 = arith.constant 0 : index
    %0 = vector.load %arg1[%c0, %c0_0] : memref<32x8xf32, #tpu.memory_space<vmem>>, vector<32x8xf32>
    %1 = arith.truncf %0 : vector<32x8xf32> to vector<32x8xbf16>
    %c0_1 = arith.constant 0 : index
    %c0_2 = arith.constant 0 : index
    %2 = vector.load %arg2[%c0_1, %c0_2] : memref<8x128xbf16, #tpu.memory_space<vmem>>, vector<8x128xbf16>
    %cst = arith.constant dense<0.000000e+00> : vector<32x128xf32>
    %3 = tpu.matmul %1, %2, %cst {dimension_numbers = #tpu.dot_dimension_numbers<[1], [0], [0], [1], [0, 0, 1, 1], [], []>} : vector<32x8xbf16>, vector<8x128xbf16>, vector<32x128xf32> -> vector<32x128xf32>
    %c0_3 = arith.constant 0 : index
    %c0_4 = arith.constant 0 : index
    %4 = vector.load %arg3[%c0_3, %c0_4] : memref<1x128xf32, #tpu.memory_space<vmem>>, vector<1x128xf32>
    %5 = vector.broadcast %4 : vector<1x128xf32> to vector<32x128xf32>
    %6 = arith.addf %3, %5 : vector<32x128xf32>
    %cst_5 = arith.constant 0.00999999977 : f32
    %7 = vector.broadcast %cst_5 : f32 to vector<32x128xf32>
    %8 = arith.mulf %7, %6 : vector<32x128xf32>
    %9 = arith.maximumf %6, %8 : vector<32x128xf32>
    %10 = arith.truncf %9 : vector<32x128xf32> to vector<32x128xbf16>
    %c0_6 = arith.constant 0 : index
    %c0_7 = arith.constant 0 : index
    %11 = vector.load %arg4[%c0_6, %c0_7] : memref<128x4xbf16, #tpu.memory_space<vmem>>, vector<128x4xbf16>
    %cst_8 = arith.constant dense<0.000000e+00> : vector<32x4xf32>
    %12 = tpu.matmul %10, %11, %cst_8 {dimension_numbers = #tpu.dot_dimension_numbers<[1], [0], [0], [1], [0, 0, 1, 1], [], []>} : vector<32x128xbf16>, vector<128x4xbf16>, vector<32x4xf32> -> vector<32x4xf32>
    %c0_9 = arith.constant 0 : index
    %c0_10 = arith.constant 0 : index
    %13 = vector.load %arg5[%c0_9, %c0_10] : memref<1x4xf32, #tpu.memory_space<vmem>>, vector<1x4xf32>
    %14 = vector.broadcast %13 : vector<1x4xf32> to vector<32x4xf32>
    %15 = arith.addf %12, %14 : vector<32x4xf32>
    %c0_11 = arith.constant 0 : index
    %c0_12 = arith.constant 0 : index
    %16 = vector.load %arg6[%c0_11, %c0_12] : memref<32x4xf32, #tpu.memory_space<vmem>>, vector<32x4xf32>
    tpu.vector_store %arg6[%c0_11, %c0_12], %15 {strides = array<i32>} : memref<32x4xf32, #tpu.memory_space<vmem>>, vector<32x4xf32>,
    return
  }
  func.func @transform_0(%arg0: i32) -> (i32, i32) {
    %c0_i32 = arith.constant 0 : i32
    %c0_i32_0 = arith.constant 0 : i32
    return %arg0, %c0_i32 : i32, i32
  }
  func.func @transform_1(%arg0: i32) -> (i32, i32) {
    %c0_i32 = arith.constant 0 : i32
    %c0_i32_0 = arith.constant 0 : i32
    %c0_i32_1 = arith.constant 0 : i32
    return %c0_i32, %c0_i32_0 : i32, i32
  }
  func.func @transform_2(%arg0: i32) -> (i32, i32) {
    %c0_i32 = arith.constant 0 : i32
    %c0_i32_0 = arith.constant 0 : i32
    %c0_i32_1 = arith.constant 0 : i32
    return %c0_i32, %c0_i32_0 : i32, i32
  }
  func.func @transform_3(%arg0: i32) -> (i32, i32) {
    %c0_i32 = arith.constant 0 : i32
    %c0_i32_0 = arith.constant 0 : i32
    %c0_i32_1 = arith.constant 0 : i32
    return %c0_i32, %c0_i32_0 : i32, i32
  }
  func.func @transform_4(%arg0: i32) -> (i32, i32) {
    %c0_i32 = arith.constant 0 : i32
    %c0_i32_0 = arith.constant 0 : i32
    %c0_i32_1 = arith.constant 0 : i32
    return %c0_i32, %c0_i32_0 : i32, i32
  }
  func.func @transform_5(%arg0: i32) -> (i32, i32) {
    %c0_i32 = arith.constant 0 : i32
    %c0_i32_0 = arith.constant 0 : i32
    return %arg0, %c0_i32 : i32, i32
  }
}

</mosaic_0001>

<llo_original>
// kernel: tpu_custom_call.1
$region0: #{tpu_custom_call.1}
  #allocation0 [shape = 'u32[]', space=smem, size = 0x4, offset = 0x4, fixed_abs, tag = 'smem constant byte address 0x4 - core index']
  #allocation1 [shape = 'u32[144,128]{1,0:T(1,128)}', space=vmem, size = 0x12000, scoped, tag = 'internal scratch']
  %s0 = inlined_call_operand.vmem [shape: f32[64,8], index: 0, kind: input, shape index: {}]
  %s1 = inlined_call_operand.vmem [shape: bf16[8,128], index: 1, kind: input, shape index: {}]
  %s2 = inlined_call_operand.vmem [shape: f32[1,128], index: 2, kind: input, shape index: {}]
  %s3 = inlined_call_operand.vmem [shape: bf16[128,4], index: 3, kind: input, shape index: {}]
  %s4 = inlined_call_operand.vmem [shape: f32[1,4], index: 4, kind: input, shape index: {}]
  %s5 = inlined_call_operand.vmem [shape: f32[64,4], index: 5, kind: output, shape index: {}]
  %s6 = sld [smem:[#allocation0]]
  $region53: #{tpu_custom_call.1} parent=0
    _
  %s8 = ssub.s32 1, %s6
  %s9 = scalar_select 0, %s8, %s6
  loop: start=0, step=1, limit=4
  $region2: #{tpu_custom_call.1} parent=0 // loop_pre_header
    _
  $region3: #{tpu_custom_call.1} parent=0 // loop_header
    %s11 = sphi 0, %s15
    %p12 = scmp.ge.s32.totalorder %s11, 4
    %s21 = sphi 0, %s23
    %s24 = sphi 0, %s21
    %s25 = sphi 0, %s24
    %s41 = sphi 0, %s25
    %s45 = sphi 0, %s45
    %s47 = sphi 0, %s45
    %s48 = sphi 0, %s47
    %s62 = sphi 0, %s48
    %s66 = sphi 0, %s66
    %s68 = sphi 0, %s66
    %s69 = sphi 0, %s68
    %s83 = sphi 0, %s69
    %s87 = sphi 0, %s87
    %s89 = sphi 0, %s87
    %s90 = sphi 0, %s89
    %s104 = sphi 0, %s90
    %s108 = sphi 0, %s108
    %s110 = sphi 0, %s108
    %s111 = sphi 0, %s110
    %s125 = sphi 0, %s111
    %s131 = sphi 0, %s133
    %s134 = sphi 0, %s131
    %s135 = sphi 0, %s134
    %s151 = sphi 0, %s135
  $region4: #{tpu_custom_call.1} parent=0 // loop_header_branch
    %14 = sbr.rel (%p12) target = $region8
  $region5: #{tpu_custom_call.1} parent=0 // loop_body
    %s16 = ssub.s32 %s11, 1
    %s17 = ssub.s32 %s11, 2
    %s18 = sadd.s32 %s11, 1
    %s19 = ssub.s32 %s11, %s18
    %p20 = scmp.eq.s32.totalorder %s19, 0
    %s22 = sadd.s32 %s21, 1
    %s23 = scalar_select %p20, %s21, %s22
    %p26 = pneg %p20
    %p27 = scmp.eq.s32.totalorder %s11, 1
    %p28 = por %p26, %p27
    %p29 = scmp.ne.s32.totalorder %s21, %s24
    %p30 = scmp.eq.s32.totalorder %s11, 0
    %p31 = por %p29, %p30
    %p32 = scmp.ne.s32.totalorder %s21, %s24
    %p33 = scmp.eq.s32.totalorder %s16, 1
    %p34 = por %p32, %p33
    %p35 = scmp.ne.s32.totalorder %s24, %s25
    %p36 = scmp.eq.s32.totalorder %s16, 0
    %p37 = por %p35, %p36
    %p38 = scmp.ne.s32.totalorder %s24, %s25
    %p39 = scmp.eq.s32.totalorder %s17, 1
    %p40 = por %p38, %p39
    %p42 = scmp.ne.s32.totalorder %s25, %s41
    %p43 = scmp.eq.s32.totalorder %s17, 0
    %p44 = por %p42, %p43
    %s46 = sadd.s32 %s45, 1
    %p49 = scmp.eq.s32.totalorder %s11, 1
    %p50 = scmp.ne.s32.totalorder %s45, %s47
    %p51 = scmp.eq.s32.totalorder %s11, 0
    %p52 = por %p50, %p51
    %p53 = scmp.ne.s32.totalorder %s45, %s47
    %p54 = scmp.eq.s32.totalorder %s16, 1
    %p55 = por %p53, %p54
    %p56 = scmp.ne.s32.totalorder %s47, %s48
    %p57 = scmp.eq.s32.totalorder %s16, 0
    %p58 = por %p56, %p57
    %p59 = scmp.ne.s32.totalorder %s47, %s48
    %p60 = scmp.eq.s32.totalorder %s17, 1
    %p61 = por %p59, %p60
    %p63 = scmp.ne.s32.totalorder %s48, %s62
    %p64 = scmp.eq.s32.totalorder %s17, 0
    %p65 = por %p63, %p64
    %s67 = sadd.s32 %s66, 1
    %p70 = scmp.eq.s32.totalorder %s11, 1
    %p71 = scmp.ne.s32.totalorder %s66, %s68
    %p72 = scmp.eq.s32.totalorder %s11, 0
    %p73 = por %p71, %p72
    %p74 = scmp.ne.s32.totalorder %s66, %s68
    %p75 = scmp.eq.s32.totalorder %s16, 1
    %p76 = por %p74, %p75
    %p77 = scmp.ne.s32.totalorder %s68, %s69
    %p78 = scmp.eq.s32.totalorder %s16, 0
    %p79 = por %p77, %p78
    %p80 = scmp.ne.s32.totalorder %s68, %s69
    %p81 = scmp.eq.s32.totalorder %s17, 1
    %p82 = por %p80, %p81
    %p84 = scmp.ne.s32.totalorder %s69, %s83
    %p85 = scmp.eq.s32.totalorder %s17, 0
    %p86 = por %p84, %p85
    %s88 = sadd.s32 %s87, 1
    %p91 = scmp.eq.s32.totalorder %s11, 1
    %p92 = scmp.ne.s32.totalorder %s87, %s89
    %p93 = scmp.eq.s32.totalorder %s11, 0
    %p94 = por %p92, %p93
    %p95 = scmp.ne.s32.totalorder %s87, %s89
    %p96 = scmp.eq.s32.totalorder %s16, 1
    %p97 = por %p95, %p96
    %p98 = scmp.ne.s32.totalorder %s89, %s90
    %p99 = scmp.eq.s32.totalorder %s16, 0
    %p100 = por %p98, %p99
    %p101 = scmp.ne.s32.totalorder %s89, %s90
    %p102 = scmp.eq.s32.totalorder %s17, 1
    %p103 = por %p101, %p102
    %p105 = scmp.ne.s32.totalorder %s90, %s104
    %p106 = scmp.eq.s32.totalorder %s17, 0
    %p107 = por %p105, %p106
    %s109 = sadd.s32 %s108, 1
    %p112 = scmp.eq.s32.totalorder %s11, 1
    %p113 = scmp.ne.s32.totalorder %s108, %s110
    %p114 = scmp.eq.s32.totalorder %s11, 0
    %p115 = por %p113, %p114
    %p116 = scmp.ne.s32.totalorder %s108, %s110
    %p117 = scmp.eq.s32.totalorder %s16, 1
    %p118 = por %p116, %p117
    %p119 = scmp.ne.s32.totalorder %s110, %s111
    %p120 = scmp.eq.s32.totalorder %s16, 0
    %p121 = por %p119, %p120
    %p122 = scmp.ne.s32.totalorder %s110, %s111
    %p123 = scmp.eq.s32.totalorder %s17, 1
    %p124 = por %p122, %p123
    %p126 = scmp.ne.s32.totalorder %s111, %s125
    %p127 = scmp.eq.s32.totalorder %s17, 0
    %p128 = por %p126, %p127
    %s129 = ssub.s32 %s11, %s18
    %p130 = scmp.eq.s32.totalorder %s129, 0
    %s132 = sadd.s32 %s131, 1
    %s133 = scalar_select %p130, %s131, %s132
    %p136 = pneg %p130
    %p137 = scmp.eq.s32.totalorder %s11, 1
    %p138 = por %p136, %p137
    %p139 = scmp.ne.s32.totalorder %s131, %s134
    %p140 = scmp.eq.s32.totalorder %s11, 0
    %p141 = por %p139, %p140
    %p142 = scmp.ne.s32.totalorder %s131, %s134
    %p143 = scmp.eq.s32.totalorder %s16, 1
    %p144 = por %p142, %p143
    %p145 = scmp.ne.s32.totalorder %s134, %s135
    %p146 = scmp.eq.s32.totalorder %s16, 0
    %p147 = por %p145, %p146
    %p148 = scmp.ne.s32.totalorder %s134, %s135
    %p149 = scmp.eq.s32.totalorder %s17, 1
    %p150 = por %p148, %p149
    %p152 = scmp.ne.s32.totalorder %s135, %s151
    %p153 = scmp.eq.s32.totalorder %s17, 0
    %p154 = por %p152, %p153
    %p155 = scmp.le.s32.totalorder 1, %s11
    %p156 = scmp.lt.s32.totalorder %s11, 3
    %p157 = pnand %p155, %p156
    %p158 = pneg %p157
    // Predicated region
    $region9: #{tpu_custom_call.1} parent=5 // pred_check
      _
    $region10: #{tpu_custom_call.1} parent=5 // pred_check_branch
      %160 = sbr.rel (%p157) target = $region12
    $region11: #{tpu_custom_call.1} parent=5 // pred_region
      %s161 = ssub.s32 %s11, 1
      // Predicated region
      $region13: #{tpu_custom_call.1} parent=11 // pred_check
        %p162 = pneg %p58
      $region14: #{tpu_custom_call.1} parent=11 // pred_check_branch
        %164 = sbr.rel (%p162) target = $region16
      $region15: #{tpu_custom_call.1} parent=11 // pred_region
        _
      $region16: #{tpu_custom_call.1} parent=11 // pred_fallthru
        _
      // Predicated region
      $region17: #{tpu_custom_call.1} parent=11 // pred_check
        %p165 = pneg %p79
      $region18: #{tpu_custom_call.1} parent=11 // pred_check_branch
        %167 = sbr.rel (%p165) target = $region20
      $region19: #{tpu_custom_call.1} parent=11 // pred_region
        _
      $region20: #{tpu_custom_call.1} parent=11 // pred_fallthru
        _
      // Predicated region
      $region21: #{tpu_custom_call.1} parent=11 // pred_check
        %p168 = pneg %p100
      $region22: #{tpu_custom_call.1} parent=11 // pred_check_branch
        %170 = sbr.rel (%p168) target = $region24
      $region23: #{tpu_custom_call.1} parent=11 // pred_region
        _
      $region24: #{tpu_custom_call.1} parent=11 // pred_fallthru
        _
      // Predicated region
      $region25: #{tpu_custom_call.1} parent=11 // pred_check
        %p171 = pneg %p121
      $region26: #{tpu_custom_call.1} parent=11 // pred_check_branch
        %173 = sbr.rel (%p171) target = $region28
      $region27: #{tpu_custom_call.1} parent=11 // pred_region
        _
      $region28: #{tpu_custom_call.1} parent=11 // pred_fallthru
        _
    $region12: #{tpu_custom_call.1} parent=5 // pred_fallthru
      _
    %p174 = scmp.lt.s32.totalorder %s11, 2
    // Predicated region
    $region29: #{tpu_custom_call.1} parent=5 // pred_check
      %p175 = pneg %p174
    $region30: #{tpu_custom_call.1} parent=5 // pred_check_branch
      %177 = sbr.rel (%p175) target = $region32
    $region31: #{tpu_custom_call.1} parent=5 // pred_region
      // Predicated region
      $region33: #{tpu_custom_call.1} parent=31 // pred_check
        %p178 = pneg %p31
      $region34: #{tpu_custom_call.1} parent=31 // pred_check_branch
        %180 = sbr.rel (%p178) target = $region36
      $region35: #{tpu_custom_call.1} parent=31 // pred_region
        %s181 = smul.u32 4, %s11
        %p182 = scmp.lt.s32.totalorder %s181, 7
        %s183 = scalar_select %p182, %s181, 7
        %s184 = smul.addr %s183, 8
        %s185 = scalar_lea.vmem %s0, %s184
        %s186 = smul.u32 4, %s11
      $region36: #{tpu_custom_call.1} parent=31 // pred_fallthru
        _
    $region32: #{tpu_custom_call.1} parent=5 // pred_fallthru
      _
    %p187 = scmp.le.s32.totalorder 1, %s11
    %p188 = scmp.lt.s32.totalorder %s11, 3
    %p189 = pnand %p187, %p188
    %p190 = pneg %p189
    // Predicated region
    $region37: #{tpu_custom_call.1} parent=5 // pred_check
      _
    $region38: #{tpu_custom_call.1} parent=5 // pred_check_branch
      %192 = sbr.rel (%p189) target = $region40
    $region39: #{tpu_custom_call.1} parent=5 // pred_region
      %s193 = ssub.s32 %s11, 1
      %s194 = smul.u32 4, %s16
      %p195 = scmp.lt.s32.totalorder %s194, 7
      %s196 = scalar_select %p195, %s194, 7
      %s197 = smul.addr %s196, 8
      %s198 = scalar_lea.vmem %s0, %s197
      %p199 = pneg %p37
      %p200 = pneg %p34
      %p201 = pneg %p58
      %p202 = pneg %p55
      %p203 = pneg %p79
      %p204 = pneg %p76
      %p205 = pneg %p100
      %p206 = pneg %p97
      %p207 = pneg %p121
      %p208 = pneg %p118
      %p209 = pneg %p147
      %p210 = pneg %p144
      %s211 = smul.u32 4, %s16
      %p212 = scmp.lt.s32.totalorder %s211, 7
      %s213 = scalar_select %p212, %s211, 7
      %s214 = smul.addr %s213, 8
      %s215 = scalar_lea.vmem %s5, %s214
      %s216 = smul.u32 4, %s16
      %p217 = scmp.lt.s32.totalorder %s216, 7
      %s218 = scalar_select %p217, %s216, 7
      %s219 = smul.addr %s218, 8
      %s220 = scalar_lea.vmem %s0, %s219
      %s221 = smul.u32 4, %s16
      %s222 = smul.u32 4, %s16
      %p223 = scmp.lt.s32.totalorder %s222, 7
      %s224 = scalar_select %p223, %s222, 7
      %s225 = smul.addr %s224, 8
      %s226 = scalar_lea.vmem %s5, %s225
      %s227 = smul.u32 4, %s16
      %v229 = vld [vmem:[%s220] sm:$0xff]
      %v230 = vld [vmem:[%s220 + $0x8] sm:$0xff]
      %v231 = vld [vmem:[%s220 + $0x10] sm:$0xff]
      %v232 = vld [vmem:[%s220 + $0x18] sm:$0xff]
      %v233 = vpack.c.bf16 %v230, %v229
      %v234 = vpack.c.bf16 %v232, %v231
      %v235 = vld [vmem:[%s1] sm:$0xf]
      %v236 = vld [vmem:[%s2] sm:$0x1]
      %v238 = vlaneseq
      %v239 = vshrl.u32 %v238, 7
      %v240 = vsub.s32 0, %v239
      %v241 = vrot.slane %v236, %v240
      %vm243 = vcmask 64512
      %v245 = vsel %vm243, %v233, 0
      %v248 = vsel %vm243, %v234, 0
      %vm250 = vcmask 1043456
      %v252 = vsel %vm250, %v235, 0
      %254 = vmatprep.subr.bf16.mxu0 0
      %255 = vmatpush1.bf16.msra.mxu0 0
      %256 = vmatprep.subr.bf16.mxu0 0
      %257 = vmatpush1.bf16.msra.mxu0 0
      %258 = vmatprep.subr.bf16.mxu0 0
      %259 = vmatpush1.bf16.msra.mxu0 0
      %260 = vmatprep.subr.bf16.mxu0 0
      %261 = vmatpush1.bf16.msra.mxu0 0
      %262 = vmatprep.subr.bf16.mxu0 0
      %263 = vmatpush1.bf16.msra.mxu0 0
      %264 = vmatprep.subr.bf16.mxu0 0
      %265 = vmatpush1.bf16.msra.mxu0 0
      %266 = vmatprep.subr.bf16.mxu0 0
      %267 = vmatpush1.bf16.msra.mxu0 0
      %268 = vmatprep.subr.bf16.mxu0 0
      %269 = vmatpush1.bf16.msra.mxu0 %v252
      %270 = vmatprep.subr.bf16.mxu0 0
      %271 = vmatpush2.bf16.msra.mxu0 0
      %272 = vmatprep.subr.bf16.mxu0 0
      %273 = vmatpush2.bf16.msra.mxu0 0
      %274 = vmatprep.subr.bf16.mxu0 0
      %275 = vmatpush2.bf16.msra.mxu0 0
      %276 = vmatprep.subr.bf16.mxu0 0
      %277 = vmatpush2.bf16.msra.mxu0 0
      %278 = vmatprep.subr.bf16.mxu0 0
      %279 = vmatpush2.bf16.msra.mxu0 0
      %280 = vmatprep.subr.bf16.mxu0 0
      %281 = vmatpush2.bf16.msra.mxu0 0
      %282 = vmatprep.subr.bf16.mxu0 0
      %283 = vmatpush2.bf16.msra.mxu0 0
      %284 = vmatprep.subr.bf16.mxu0 0
      %285 = vmatpush2.bf16.msra.mxu0 0
      %286 = vmatprep.mubr.bf16.mxu0 0
      %287 = vmatmul.mubr.bf16.gmra.mxu0 %v245
      %v288 = vpop.f32.mrf.mxu0
      %v289 = vadd.f32 %v241, %v288
      %v290 = vpop.f32.mrf.mxu0
      %v291 = vpop.f32.mrf.mxu0
      %v292 = vadd.f32 %v241, %v291
      %v293 = vpop.f32.mrf.mxu0
      %294 = vmatprep.mubr.bf16.mxu0 0
      %295 = vmatmul.mubr.bf16.gmra.mxu0 %v248
      %v296 = vpop.f32.mrf.mxu0
      %v297 = vadd.f32 %v241, %v296
      %v298 = vpop.f32.mrf.mxu0
      %v299 = vpop.f32.mrf.mxu0
      %v300 = vadd.f32 %v241, %v299
      %v301 = vpop.f32.mrf.mxu0
      %302 = vdwg.mxu0
      %v303 = vmul.f32 %v289, 0.01
      %v304 = vmul.f32 %v292, 0.01
      %v305 = vmul.f32 %v297, 0.01
      %v306 = vmul.f32 %v300, 0.01
      %v307 = vmax.f32 %v289, %v303
      %v308 = vmax.f32 %v292, %v304
      %v309 = vmax.f32 %v297, %v305
      %v310 = vmax.f32 %v300, %v306
      %v311 = vpack.c.bf16 %v308, %v307
      %v312 = vpack.c.bf16 %v310, %v309
      %v313 = vld [vmem:[%s3] sm:$0xf]
      %v314 = vld [vmem:[%s3 + $0x4] sm:$0xf]
      %v315 = vld [vmem:[%s3 + $0x8] sm:$0xf]
      %v316 = vld [vmem:[%s3 + $0xc] sm:$0xf]
      %v317 = vld [vmem:[%s3 + $0x10] sm:$0xf]
      %v318 = vld [vmem:[%s3 + $0x14] sm:$0xf]
      %v319 = vld [vmem:[%s3 + $0x18] sm:$0xf]
      %v320 = vld [vmem:[%s3 + $0x1c] sm:$0xf]
      %v321 = vld [vmem:[%s3 + $0x20] sm:$0xf]
      %v322 = vld [vmem:[%s3 + $0x24] sm:$0xf]
      %v323 = vld [vmem:[%s3 + $0x28] sm:$0xf]
      %v324 = vld [vmem:[%s3 + $0x2c] sm:$0xf]
      %v325 = vld [vmem:[%s3 + $0x30] sm:$0xf]
      %v326 = vld [vmem:[%s3 + $0x34] sm:$0xf]
      %v327 = vld [vmem:[%s3 + $0x38] sm:$0xf]
      %v328 = vld [vmem:[%s3 + $0x3c] sm:$0xf]
      %v329 = vld [vmem:[%s4] sm:$0x1]
      %v331 = vlaneseq
      %v332 = vshrl.u32 %v331, 7
      %v333 = vsub.s32 0, %v332
      %v334 = vrot.slane %v329, %v333
      %v352 = vunpack.c.l.b16 %v313
      %v353 = vunpack.c.l.b16 %v314
      %v354 = vunpack.c.l.b16 %v315
      %v355 = vunpack.c.l.b16 %v316
      %v356 = vunpack.c.l.b16 %v317
      %v357 = vunpack.c.l.b16 %v318
      %v358 = vunpack.c.l.b16 %v319
      %v359 = vunpack.c.l.b16 %v320
      %v360 = vunpack.c.l.b16 %v321
      %v361 = vunpack.c.l.b16 %v322
      %v362 = vunpack.c.l.b16 %v323
      %v363 = vunpack.c.l.b16 %v324
      %v364 = vunpack.c.l.b16 %v325
      %v365 = vunpack.c.l.b16 %v326
      %v366 = vunpack.c.l.b16 %v327
      %v367 = vunpack.c.l.b16 %v328
      %v368 = vpack.c.b16 %v353, %v352
      %v369 = vpack.c.b16 %v355, %v354
      %v370 = vpack.c.b16 %v357, %v356
      %v371 = vpack.c.b16 %v359, %v358
      %v372 = vpack.c.b16 %v361, %v360
      %v373 = vpack.c.b16 %v363, %v362
      %v374 = vpack.c.b16 %v365, %v364
      %v375 = vpack.c.b16 %v367, %v366
      %384 = vmatprep.subr.bf16.mxu0 0
      %385 = vmatpush1.bf16.msra.mxu0 %v375
      %386 = vmatprep.subr.bf16.mxu0 0
      %387 = vmatpush1.bf16.msra.mxu0 %v374
      %388 = vmatprep.subr.bf16.mxu0 0
      %389 = vmatpush1.bf16.msra.mxu0 %v373
      %390 = vmatprep.subr.bf16.mxu0 0
      %391 = vmatpush1.bf16.msra.mxu0 %v372
      %392 = vmatprep.subr.bf16.mxu0 0
      %393 = vmatpush1.bf16.msra.mxu0 %v371
      %394 = vmatprep.subr.bf16.mxu0 0
      %395 = vmatpush1.bf16.msra.mxu0 %v370
      %396 = vmatprep.subr.bf16.mxu0 0
      %397 = vmatpush1.bf16.msra.mxu0 %v369
      %398 = vmatprep.subr.bf16.mxu0 0
      %399 = vmatpush1.bf16.msra.mxu0 %v368
      %400 = vmatprep.subr.bf16.mxu0 0
      %401 = vmatpush2.bf16.msra.mxu0 0
      %402 = vmatprep.subr.bf16.mxu0 0
      %403 = vmatpush2.bf16.msra.mxu0 0
      %404 = vmatprep.subr.bf16.mxu0 0
      %405 = vmatpush2.bf16.msra.mxu0 0
      %406 = vmatprep.subr.bf16.mxu0 0
      %407 = vmatpush2.bf16.msra.mxu0 0
      %408 = vmatprep.subr.bf16.mxu0 0
      %409 = vmatpush2.bf16.msra.mxu0 0
      %410 = vmatprep.subr.bf16.mxu0 0
      %411 = vmatpush2.bf16.msra.mxu0 0
      %412 = vmatprep.subr.bf16.mxu0 0
      %413 = vmatpush2.bf16.msra.mxu0 0
      %414 = vmatprep.subr.bf16.mxu0 0
      %415 = vmatpush2.bf16.msra.mxu0 0
      %416 = vmatprep.mubr.bf16.mxu0 0
      %417 = vmatmul.mubr.bf16.gmra.mxu0 %v311
      %v418 = vpop.f32.mrf.mxu0
      %v419 = vadd.f32 %v334, %v418
      %v420 = vpop.f32.mrf.mxu0
      %v421 = vpop.f32.mrf.mxu0
      %v422 = vadd.f32 %v334, %v421
      %v423 = vpop.f32.mrf.mxu0
      %424 = vmatprep.mubr.bf16.mxu0 0
      %425 = vmatmul.mubr.bf16.gmra.mxu0 %v312
      %v426 = vpop.f32.mrf.mxu0
      %v427 = vadd.f32 %v334, %v426
      %v428 = vpop.f32.mrf.mxu0
      %v429 = vpop.f32.mrf.mxu0
      %v430 = vadd.f32 %v334, %v429
      %v431 = vpop.f32.mrf.mxu0
      %432 = vdwg.mxu0
      %vm433 = vcmask 31744
      %434 = vst.msk [vmem:[%s226] sm:$0xff] %vm433, %v419
      %435 = vst.msk [vmem:[%s226 + $0x8] sm:$0xff] %vm433, %v422
      %436 = vst.msk [vmem:[%s226 + $0x10] sm:$0xff] %vm433, %v427
      %437 = vst.msk [vmem:[%s226 + $0x18] sm:$0xff] %vm433, %v430
      %s438 = smul.u32 4, %s16
      %p439 = scmp.lt.s32.totalorder %s438, 7
      %s440 = scalar_select %p439, %s438, 7
      %s441 = smul.addr %s440, 8
      %s442 = scalar_lea.vmem %s5, %s441
      // Predicated region
      $region41: #{tpu_custom_call.1} parent=39 // pred_check
        %p443 = pneg %p144
      $region42: #{tpu_custom_call.1} parent=39 // pred_check_branch
        %445 = sbr.rel (%p443) target = $region44
      $region43: #{tpu_custom_call.1} parent=39 // pred_region
        %s446 = smul.u32 4, %s16
      $region44: #{tpu_custom_call.1} parent=39 // pred_fallthru
        _
    $region40: #{tpu_custom_call.1} parent=5 // pred_fallthru
      _
    %p447 = scmp.le.s32.totalorder 2, %s11
    // Predicated region
    $region45: #{tpu_custom_call.1} parent=5 // pred_check
      %p448 = pneg %p447
    $region46: #{tpu_custom_call.1} parent=5 // pred_check_branch
      %450 = sbr.rel (%p448) target = $region48
    $region47: #{tpu_custom_call.1} parent=5 // pred_region
      %s451 = ssub.s32 %s11, 2
      // Predicated region
      $region49: #{tpu_custom_call.1} parent=47 // pred_check
        %p452 = pneg %p150
      $region50: #{tpu_custom_call.1} parent=47 // pred_check_branch
        %454 = sbr.rel (%p452) target = $region52
      $region51: #{tpu_custom_call.1} parent=47 // pred_region
        %s455 = smul.u32 4, %s17
        %p456 = scmp.lt.s32.totalorder %s455, 7
        %s457 = scalar_select %p456, %s455, 7
        %s458 = smul.addr %s457, 8
        %s459 = scalar_lea.vmem %s5, %s458
      $region52: #{tpu_custom_call.1} parent=47 // pred_fallthru
        _
    $region48: #{tpu_custom_call.1} parent=5 // pred_fallthru
      _
  $region6: #{tpu_custom_call.1} parent=0 // loop_footer
    %s15 = sadd.s32 1, %s11
  $region7: #{tpu_custom_call.1} parent=0 // loop_footer_branch
    %10 = sbr.rel target = $region3
  $region8: #{tpu_custom_call.1} parent=0 // loop_exit
    _

</llo_original>
